<compile_context>
chip_gen: v7x
topology: tpu7x:2x2x1
jax: 0.10.0
libtpu: 0.0.40
codegen_flags: <defaults>
</compile_context>

<pallas_src>
import jax
import jax.numpy as jnp
from jax import lax
from jax.experimental import pallas as pl
from jax.experimental.pallas import tpu as pltpu


def _loss_cse_kernel(data_ref, tgt_ref, cost_ref, w_ref, out_ref):
    data = data_ref[...].astype(jnp.float32)      # (N, C) logits
    tgt = tgt_ref[...]                            # (N, 1) int32 labels
    cost = cost_ref[...].astype(jnp.float32)      # (C, C) cost matrix (untransposed)
    w = w_ref[...].astype(jnp.float32)            # (1, Kpad) zero-padded conv1 weight

    n, c = data.shape

    # One-hot encode targets (VPU compare against a lane iota).
    col = lax.broadcasted_iota(jnp.int32, (n, c), 1)
    onehot = (col == tgt).astype(jnp.float32)     # (N, C)

    # --- log-sum-exp pieces (numerically safe) ---
    m = jnp.max(data, axis=1, keepdims=True)      # (N, 1)
    ez = jnp.exp(data - m)                        # (N, C)
    sez = jnp.sum(ez, axis=1, keepdims=True)      # (N, 1)
    lse = jnp.log(sez) + m                        # (N, 1)

    # --- cost-sensitive numerator on the (otherwise idle) MXU ---
    # S[n, k] = sum_j ez[n, j] * cost[j, k]  =>  S[n, t_n] = sum_j ez[n,j] c[j,t_n]
    S = jnp.dot(ez, cost, preferred_element_type=jnp.float32)   # (N, C)

    # 1/sez on the EUP slot + one Newton step for full f32 accuracy.
    r = pl.reciprocal(sez, approx=True)           # (N, 1)
    r = r * (2.0 - sez * r)

    # --- single fused lane reduce for both the picked logit and the l2 term ---
    # sum_j onehot*(S*r - data) = S[n,t_n]/sez[n] - data[n,t_n] = l2_row - picked
    per_sample = lse + jnp.sum(onehot * (S * r - data), axis=1, keepdims=True)
    data_term = jnp.sum(per_sample, keepdims=True) * (1.0 / n)  # (1, 1): l1 + l2

    # --- weight norms: two independent reductions (co-issue on the XLUs) ---
    l1_w = jnp.sum(jnp.abs(w), keepdims=True)                   # (1, 1)
    l2_w = jnp.sqrt(jnp.sum(w * w, keepdims=True))              # (1, 1)

    total = data_term + l1_w - l2_w                             # (1, 1)
    out_ref[0, 0] = total[0, 0]                                 # scalar -> SMEM


def loss_cse(data, target, cost, conv_weight):
    """data: [N, C] logits, target: [N] int labels, cost: [C, C] cost matrix,
    conv_weight: [O, I, KH, KW]. Returns scalar f32 loss."""
    n, _ = data.shape
    # Layout plumbing only (no dtype upcasts here; kernel casts to f32):
    tgt2d = target.astype(jnp.int32).reshape(n, 1)
    w2d = conv_weight.reshape(1, -1)              # lane-dense (1, K) weight slab
    k = w2d.shape[1]
    k_pad = ((k + 127) // 128) * 128              # zero-pad to full 128-lane vregs
    if k_pad != k:                                # exact for L1 and sum-of-squares
        w2d = jnp.pad(w2d, ((0, 0), (0, k_pad - k)))
    # NOTE: for a large batch (N >> 8), add a grid over N with (TN, C) blocks
    # marked "parallel" (uses both TCs on v7x) emitting per-block partial sums,
    # and transpose data to (C, N) so N sits on the 128-lane axis.

    out = pl.pallas_call(
        _loss_cse_kernel,
        out_shape=jax.ShapeDtypeStruct((1, 1), jnp.float32),
        in_specs=[
            pl.BlockSpec(memory_space=pltpu.VMEM),   # data   (N, C), native dtype
            pl.BlockSpec(memory_space=pltpu.VMEM),   # target (N, 1) int32
            pl.BlockSpec(memory_space=pltpu.VMEM),   # cost   (C, C), native dtype
            pl.BlockSpec(memory_space=pltpu.VMEM),   # conv weight (1, Kpad)
        ],
        out_specs=pl.BlockSpec(memory_space=pltpu.SMEM),
    )(data, tgt2d, cost, w2d)
    return out[0, 0]


def _reference(data, target, cost, conv_weight):
    """Pure-JAX reference mirroring the PyTorch forward."""
    n, _ = data.shape
    lse = jax.nn.logsumexp(data, axis=1)
    picked = data[jnp.arange(n), target]
    l1 = jnp.mean(lse - picked)
    p = jax.nn.softmax(data, axis=1)
    cost_sens = cost[:, target].T                 # (N, C)
    l2 = jnp.mean(jnp.sum(p * cost_sens, axis=1))
    w = conv_weight
    loss_x = jnp.sum(jnp.abs(w)) - jnp.sqrt(jnp.sum(w * w))
    return l1 + l2 + loss_x


if __name__ == "__main__":
    key = jax.random.PRNGKey(0)
    k_data, k_tgt, k_cost, k_w = jax.random.split(key, 4)

    N, C = 8, 10                                  # batch of 8, 10 MNIST classes
    data = jax.random.normal(k_data, (N, C), dtype=jnp.float32)
    target = jax.random.randint(k_tgt, (N,), 0, C, dtype=jnp.int32)
    cost = jax.random.uniform(k_cost, (C, C), dtype=jnp.float32)
    # model.conv1 for MNIST: nn.Conv2d(1, 10, kernel_size=5) -> weight (10,1,5,5)
    conv_w = 0.1 * jax.random.normal(k_w, (10, 1, 5, 5), dtype=jnp.float32)

    out = loss_cse(data, target, cost, conv_w)
    out = jax.block_until_ready(out)

    ref = _reference(data, target, cost, conv_w)
    assert jnp.allclose(out, ref, rtol=1e-5, atol=1e-5), (out, ref)

    print("KERNEL_OK")
</pallas_src>

<mosaic_0001>
module attributes {stable_mosaic.version = 11 : i64} {
  func.func @_loss_cse_kernel(%arg0: memref<8x10xf32, #tpu.memory_space<vmem>>, %arg1: memref<8x1xi32, #tpu.memory_space<vmem>>, %arg2: memref<10x10xf32, #tpu.memory_space<vmem>>, %arg3: memref<1x256xf32, #tpu.memory_space<vmem>>, %arg4: memref<1x1xf32, #tpu.memory_space<smem>>) attributes {dimension_semantics = [], scalar_prefetch = 0 : i64, scratch_operands = 0 : i64, tpu.core_type = #tpu.core_type<tc>} {
    %c0 = arith.constant 0 : index
    %c0_0 = arith.constant 0 : index
    %0 = vector.load %arg0[%c0, %c0_0] : memref<8x10xf32, #tpu.memory_space<vmem>>, vector<8x10xf32>
    %c0_1 = arith.constant 0 : index
    %c0_2 = arith.constant 0 : index
    %1 = vector.load %arg1[%c0_1, %c0_2] : memref<8x1xi32, #tpu.memory_space<vmem>>, vector<8x1xi32>
    %c0_3 = arith.constant 0 : index
    %c0_4 = arith.constant 0 : index
    %2 = vector.load %arg2[%c0_3, %c0_4] : memref<10x10xf32, #tpu.memory_space<vmem>>, vector<10x10xf32>
    %c0_5 = arith.constant 0 : index
    %c0_6 = arith.constant 0 : index
    %3 = vector.load %arg3[%c0_5, %c0_6] : memref<1x256xf32, #tpu.memory_space<vmem>>, vector<1x256xf32>
    %4 = tpu.iota {dimensions = array<i32: 1>} : vector<8x10xi32>
    %5 = vector.broadcast %1 : vector<8x1xi32> to vector<8x10xi32>
    %6 = arith.cmpi eq, %4, %5 : vector<8x10xi32>
    %7 = arith.extui %6 : vector<8x10xi1> to vector<8x10xi32>
    %8 = arith.sitofp %7 : vector<8x10xi32> to vector<8x10xf32>
    %cst = arith.constant dense<0xFF800000> : vector<8xf32>
    %9 = vector.multi_reduction <maximumf>, %0, %cst [1] : vector<8x10xf32> to vector<8xf32>
    %10 = vector.shape_cast %9 : vector<8xf32> to vector<8x1xf32>
    %11 = vector.broadcast %10 : vector<8x1xf32> to vector<8x10xf32>
    %12 = arith.subf %0, %11 : vector<8x10xf32>
    %13 = math.exp %12 : vector<8x10xf32>
    %cst_7 = arith.constant dense<0.000000e+00> : vector<8xf32>
    %14 = vector.multi_reduction <add>, %13, %cst_7 [1] : vector<8x10xf32> to vector<8xf32>
    %15 = vector.shape_cast %14 : vector<8xf32> to vector<8x1xf32>
    %16 = math.log %15 : vector<8x1xf32>
    %17 = arith.addf %16, %10 : vector<8x1xf32>
    %cst_8 = arith.constant dense<0.000000e+00> : vector<8x10xf32>
    %18 = tpu.matmul %13, %2, %cst_8 {dimension_numbers = #tpu.dot_dimension_numbers<[1], [0], [0], [1], [0, 0, 1, 1], [], []>} : vector<8x10xf32>, vector<10x10xf32>, vector<8x10xf32> -> vector<8x10xf32>
    %19 = tpu.reciprocal %15 {approx = true} : vector<8x1xf32> -> vector<8x1xf32>
    %20 = arith.mulf %15, %19 : vector<8x1xf32>
    %cst_9 = arith.constant 2.000000e+00 : f32
    %21 = vector.broadcast %cst_9 : f32 to vector<8x1xf32>
    %22 = arith.subf %21, %20 : vector<8x1xf32>
    %23 = arith.mulf %19, %22 : vector<8x1xf32>
    %24 = vector.broadcast %23 : vector<8x1xf32> to vector<8x10xf32>
    %25 = arith.mulf %18, %24 : vector<8x10xf32>
    %26 = arith.subf %25, %0 : vector<8x10xf32>
    %27 = arith.mulf %8, %26 : vector<8x10xf32>
    %cst_10 = arith.constant dense<0.000000e+00> : vector<8xf32>
    %28 = vector.multi_reduction <add>, %27, %cst_10 [1] : vector<8x10xf32> to vector<8xf32>
    %29 = vector.shape_cast %28 : vector<8xf32> to vector<8x1xf32>
    %30 = arith.addf %17, %29 : vector<8x1xf32>
    %31 = vector.shape_cast %30 : vector<8x1xf32> to vector<1x8x1xf32>
    %cst_11 = arith.constant dense<0.000000e+00> : vector<1xf32>
    %32 = vector.multi_reduction <add>, %31, %cst_11 [1, 2] : vector<1x8x1xf32> to vector<1xf32>
    %33 = vector.shape_cast %32 : vector<1xf32> to vector<1x1x1xf32>
    %34 = vector.extract %33[0, 0, 0] : f32 from vector<1x1x1xf32>
    %35 = vector.broadcast %34 : f32 to vector<1x1xf32>
    %cst_12 = arith.constant 1.250000e-01 : f32
    %36 = vector.broadcast %cst_12 : f32 to vector<1x1xf32>
    %37 = arith.mulf %35, %36 : vector<1x1xf32>
    %38 = math.absf %3 : vector<1x256xf32>
    %39 = vector.shape_cast %38 : vector<1x256xf32> to vector<1x1x256xf32>
    %cst_13 = arith.constant dense<0.000000e+00> : vector<1xf32>
    %40 = vector.multi_reduction <add>, %39, %cst_13 [1, 2] : vector<1x1x256xf32> to vector<1xf32>
    %41 = vector.shape_cast %40 : vector<1xf32> to vector<1x1x1xf32>
    %42 = vector.extract %41[0, 0, 0] : f32 from vector<1x1x1xf32>
    %43 = vector.broadcast %42 : f32 to vector<1x1xf32>
    %44 = arith.mulf %3, %3 : vector<1x256xf32>
    %45 = vector.shape_cast %44 : vector<1x256xf32> to vector<1x1x256xf32>
    %cst_14 = arith.constant dense<0.000000e+00> : vector<1xf32>
    %46 = vector.multi_reduction <add>, %45, %cst_14 [1, 2] : vector<1x1x256xf32> to vector<1xf32>
    %47 = vector.shape_cast %46 : vector<1xf32> to vector<1x1x1xf32>
    %48 = vector.extract %47[0, 0, 0] : f32 from vector<1x1x1xf32>
    %49 = vector.broadcast %48 : f32 to vector<1x1xf32>
    %50 = math.sqrt %49 : vector<1x1xf32>
    %51 = arith.addf %37, %43 : vector<1x1xf32>
    %52 = arith.subf %51, %50 : vector<1x1xf32>
    %53 = vector.extract %52[0, 0] : f32 from vector<1x1xf32>
    %c0_15 = arith.constant 0 : index
    %c0_16 = arith.constant 0 : index
    %54 = memref.load %arg4[%c0_15, %c0_16] : memref<1x1xf32, #tpu.memory_space<smem>>
    memref.store %53, %arg4[%c0_15, %c0_16] : memref<1x1xf32, #tpu.memory_space<smem>>
    return
  }
}

</mosaic_0001>

<llo_original>
// kernel: tpu_custom_call.1
$region0: #{tpu_custom_call.1}
  #allocation0 [shape = 'u32[]', space=smem, size = 0x4, offset = 0x4, fixed_abs, tag = 'smem constant byte address 0x4 - core index']
  #allocation1 [shape = 'u32[144,128]{1,0:T(1,128)}', space=vmem, size = 0x12000, scoped, tag = 'internal scratch']
  %s0 = inlined_call_operand.hbm [shape: f32[8,10], index: 0, kind: input, shape index: {}]
  %s1 = inlined_call_operand.vmem [shape: s32[8,1], index: 1, kind: input, shape index: {}]
  %s2 = inlined_call_operand.vmem [shape: f32[10,10], index: 2, kind: input, shape index: {}]
  %s3 = inlined_call_operand.vmem [shape: f32[1,256], index: 3, kind: input, shape index: {}]
  %s4 = inlined_call_operand.hbm [shape: f32[1,1], index: 4, kind: output, shape index: {}]
  %s5 = sld [smem:[#allocation0]]
  $region30: #{tpu_custom_call.1} parent=0
    _
  %s7 = ssub.s32 1, %s5
  %s8 = scalar_select 0, %s7, %s5
  $region1: #{tpu_custom_call.1} parent=0
    #allocation2 [shape = 'u8[4096]{0}', space=vmem, size = 0x1000, scoped, tag = 'input window, operand 0, single buffered']
    #allocation3 [shape = 's32[1]{0}', space=sflag, size = 0x4, scoped, tag = 'scoped memory for tpu_custom_call.1']
    #allocation4 [shape = 's32[1]{0}', space=sflag, size = 0x4, scoped, tag = 'scoped memory for tpu_custom_call.1']
    #allocation5 [shape = 'u8[512]{0}', space=smem, size = 0x200, scoped, tag = 'output window, operand 0, single buffered']
    %9 = vsyncpa [#allocation3], 0
    %10 = vsyncpa [#allocation4], 0
    // Predicated region
    $region2: #{tpu_custom_call.1} parent=1 // pred_check
      _
    $region3: #{tpu_custom_call.1} parent=1 // pred_check_branch
      %12 = sbr.rel (0) target = $region5
    $region4: #{tpu_custom_call.1} parent=1 // pred_region
      %s14 = ssub.s32 128, 128
      %15 = vsyncadd [#allocation3], %s14
      %s17 = sshll.u32 [#allocation2], 4
      %s18 = int_to_ptr.vmem [resolvable:$true] %s17
      %20 = dma.hbm_to_vmem [thread:$0]  %s0, 128, %s18, [#allocation3]
    $region5: #{tpu_custom_call.1} parent=1 // pred_fallthru
      _
    // Predicated region
    $region6: #{tpu_custom_call.1} parent=1 // pred_check
      _
    $region7: #{tpu_custom_call.1} parent=1 // pred_check_branch
      %22 = sbr.rel (0) target = $region9
    $region8: #{tpu_custom_call.1} parent=1 // pred_region
      _
    $region9: #{tpu_custom_call.1} parent=1 // pred_fallthru
      _
    // Predicated region
    $region10: #{tpu_custom_call.1} parent=1 // pred_check
      _
    $region11: #{tpu_custom_call.1} parent=1 // pred_check_branch
      %24 = sbr.rel (0) target = $region13
    $region12: #{tpu_custom_call.1} parent=1 // pred_region
      _
    $region13: #{tpu_custom_call.1} parent=1 // pred_fallthru
      _
    // Predicated region
    $region14: #{tpu_custom_call.1} parent=1 // pred_check
      _
    $region15: #{tpu_custom_call.1} parent=1 // pred_check_branch
      %26 = sbr.rel (0) target = $region17
    $region16: #{tpu_custom_call.1} parent=1 // pred_region
      _
    $region17: #{tpu_custom_call.1} parent=1 // pred_fallthru
      _
    // Predicated region
    $region18: #{tpu_custom_call.1} parent=1 // pred_check
      _
    $region19: #{tpu_custom_call.1} parent=1 // pred_check_branch
      %28 = sbr.rel (0) target = $region21
    $region20: #{tpu_custom_call.1} parent=1 // pred_region
      %29 = dma.done [#allocation3], 128
    $region21: #{tpu_custom_call.1} parent=1 // pred_fallthru
      _
    %v30 = vld [vmem:[#allocation2] sm:$0xff]
    %v31 = vld [vmem:[%s1] sm:$0xff]
    %v32 = vld [vmem:[%s2] sm:$0xff]
    %v33 = vld [vmem:[%s2 + $0x8] sm:$0x3]
    %v34 = vld [vmem:[%s3] sm:$0x3]
    %v35 = vlaneseq
    %v36 = vand.u32 %v35, 127
    %37 = vset.pattern.permute.xlu0 0
    %38 = vperm.xlu0 %37, %v31
    %v39 = vpop.permute.xlu0 %38
    %vm40 = vcmp.eq.s32.totalorder %v36, %v39
    %v41 = vsel %vm40, 1, 0
    %v42 = vcvt.s32.f32 %v41
    %vm43 = vcmask 80896
    %v44 = vsel %vm43, %v30, -inf
    %45 = vmax.xlane.f32.xlu0 %v44
    %v46 = vpop.xlane.xlu0 %45
    %v47 = vsub.f32 %v30, %v46
    %v48 = vmul.f32 %v47, 1.442695
    %v49 = vpow.pop %v48
    %v50 = vsel %vm43, %v49, 0.0
    %51 = vadd.xlane.f32.xlu0 %v50
    %v52 = vpop.xlane.xlu0 %51
    %v53 = vlog2.pop %v52
    %v54 = vmul.f32 %v53, 0.6931472
    %v55 = vadd.f32 %v54, %v46
    %v57 = vsel %vm43, %v49, 0
    %vm59 = vcmask 1041408
    %v61 = vsel %vm59, %v33, 0
    %63 = vmatprep.subr.mxu0 0.0
    %64 = vmatpush1.msra.mxu0 %v32
    %65 = vmatprep.subr.mxu0 0.0
    %66 = vmatpush1.msra.mxu0 %v61
    %67 = vmatprep.subr.mxu0 0.0
    %68 = vmatpush1.msra.mxu0 0.0
    %69 = vmatprep.subr.mxu0 0.0
    %70 = vmatpush1.msra.mxu0 0.0
    %71 = vmatprep.subr.mxu0 0.0
    %72 = vmatpush1.msra.mxu0 0.0
    %73 = vmatprep.subr.mxu0 0.0
    %74 = vmatpush1.msra.mxu0 0.0
    %75 = vmatprep.subr.mxu0 0.0
    %76 = vmatpush1.msra.mxu0 0.0
    %77 = vmatprep.subr.mxu0 0.0
    %78 = vmatpush1.msra.mxu0 0.0
    %79 = vmatprep.subr.mxu0 0.0
    %80 = vmatpush1.msra.mxu0 0.0
    %81 = vmatprep.subr.mxu0 0.0
    %82 = vmatpush1.msra.mxu0 0.0
    %83 = vmatprep.subr.mxu0 0.0
    %84 = vmatpush1.msra.mxu0 0.0
    %85 = vmatprep.subr.mxu0 0.0
    %86 = vmatpush1.msra.mxu0 0.0
    %87 = vmatprep.subr.mxu0 0.0
    %88 = vmatpush1.msra.mxu0 0.0
    %89 = vmatprep.subr.mxu0 0.0
    %90 = vmatpush1.msra.mxu0 0.0
    %91 = vmatprep.subr.mxu0 0.0
    %92 = vmatpush1.msra.mxu0 0.0
    %93 = vmatprep.subr.mxu0 0.0
    %94 = vmatpush1.msra.mxu0 0.0
    %95 = vmatprep.subr.mxu0 0.0
    %96 = vmatpush1.msra.mxu0 0.0
    %97 = vmatprep.subr.mxu0 0.0
    %98 = vmatpush1.msra.mxu0 0.0
    %99 = vmatprep.subr.mxu0 0.0
    %100 = vmatpush1.msra.mxu0 0.0
    %101 = vmatprep.subr.mxu0 0.0
    %102 = vmatpush1.msra.mxu0 0.0
    %103 = vmatprep.subr.mxu0 0.0
    %104 = vmatpush1.msra.mxu0 0.0
    %105 = vmatprep.subr.mxu0 0.0
    %106 = vmatpush1.msra.mxu0 0.0
    %107 = vmatprep.subr.mxu0 0.0
    %108 = vmatpush1.msra.mxu0 0.0
    %109 = vmatprep.subr.mxu0 0.0
    %110 = vmatpush1.msra.mxu0 0.0
    %111 = vmatprep.subr.mxu0 0.0
    %112 = vmatpush1.msra.mxu0 0.0
    %113 = vmatprep.subr.mxu0 0.0
    %114 = vmatpush1.msra.mxu0 0.0
    %115 = vmatprep.subr.mxu0 0.0
    %116 = vmatpush1.msra.mxu0 0.0
    %117 = vmatprep.subr.mxu0 0.0
    %118 = vmatpush1.msra.mxu0 0.0
    %119 = vmatprep.subr.mxu0 0.0
    %120 = vmatpush1.msra.mxu0 0.0
    %121 = vmatprep.subr.mxu0 0.0
    %122 = vmatpush1.msra.mxu0 0.0
    %123 = vmatprep.subr.mxu0 0.0
    %124 = vmatpush1.msra.mxu0 0.0
    %125 = vmatprep.subr.mxu0 0.0
    %126 = vmatpush1.msra.mxu0 0.0
    %127 = vmatprep.mubr.f32.mxu0 0.0
    %128 = vmatmul.mubr.f32.gmra.mrb[0].mxu0 %v57
    %v129 = vpop.f32.mrb[0].mxu0
    %v130 = vadd.f32 0.0, %v129
    %v131 = vpop.f32.mrb[0].mxu0
    %132 = vdwg.mxu0
    %v133 = vrcp.pop %v52
    %v134 = vmul.f32 %v52, %v133
    %v135 = vsub.f32 2.0, %v134
    %v136 = vmul.f32 %v133, %v135
    %v137 = vmul.f32 %v130, %v136
    %v138 = vsub.f32 %v137, %v30
    %v139 = vmul.f32 %v42, %v138
    %v140 = vsel %vm43, %v139, 0.0
    %141 = vadd.xlane.f32.xlu0 %v140
    %v142 = vpop.xlane.xlu0 %141
    %v143 = vadd.f32 %v55, %v142
    %vm144 = vcmask 7168
    %v145 = vsel %vm144, %v143, 0.0
    %146 = vadd.xlane.f32.xlu0 %v145
    %v147 = vpop.xlane.xlu0 %146
    %v148 = vrot.slane %v147, 4
    %v149 = vadd.f32 %v147, %v148
    %v150 = vrot.slane %v149, 2
    %v151 = vadd.f32 %v149, %v150
    %v152 = vrot.slane %v151, 1
    %v153 = vadd.f32 %v151, %v152
    %s154 = vtos %v153
    %v155 = vstv %s154
    %v156 = vmul.f32 %v155, 0.125
    %v157 = vand.u32 2147483647, %v34
    %v159 = vlaneseq
    %v160 = vshrl.u32 %v159, 7
    %v161 = vsub.s32 0, %v160
    %v162 = vrot.slane %v157, %v161
    %v163 = vlaneseq
    %v164 = vshrl.u32 %v163, 7
    %v165 = vsub.s32 1, %v164
    %v166 = vrot.slane %v157, %v165
    %vm169 = vcmask 1040384
    %v170 = vsel %vm169, %v162, 0.0
    %v171 = vsel %vm169, %v166, 0.0
    %v172 = vadd.f32 %v170, %v171
    %173 = vadd.xlane.f32.xlu0 %v172
    %v174 = vpop.xlane.xlu0 %173
    %v175 = vrot.slane %v174, 4
    %v176 = vadd.f32 %v174, %v175
    %v177 = vrot.slane %v176, 2
    %v178 = vadd.f32 %v176, %v177
    %v179 = vrot.slane %v178, 1
    %v180 = vadd.f32 %v178, %v179
    %s181 = vtos %v180
    %v182 = vstv %s181
    %v183 = vmul.f32 %v34, %v34
    %v185 = vlaneseq
    %v186 = vshrl.u32 %v185, 7
    %v187 = vsub.s32 0, %v186
    %v188 = vrot.slane %v183, %v187
    %v189 = vlaneseq
    %v190 = vshrl.u32 %v189, 7
    %v191 = vsub.s32 1, %v190
    %v192 = vrot.slane %v183, %v191
    %v195 = vsel %vm169, %v188, 0.0
    %v196 = vsel %vm169, %v192, 0.0
    %v197 = vadd.f32 %v195, %v196
    %198 = vadd.xlane.f32.xlu0 %v197
    %v199 = vpop.xlane.xlu0 %198
    %v200 = vrot.slane %v199, 4
    %v201 = vadd.f32 %v199, %v200
    %v202 = vrot.slane %v201, 2
    %v203 = vadd.f32 %v201, %v202
    %v204 = vrot.slane %v203, 1
    %v205 = vadd.f32 %v203, %v204
    %s206 = vtos %v205
    %v207 = vstv %s206
    %v208 = vrsqrt.pop %v207
    %v209 = vmul.f32 %v207, %v208
    %vm210 = vcmp.eq.f32.partialorder %v207, inf
    %v211 = vsel %vm210, %v207, %v209
    %vm212 = vcmp.eq.f32.partialorder %v207, 0.0
    %v213 = vand.u32 %v207, 2147483648
    %v214 = vsel %vm212, %v213, %v211
    %v215 = vadd.f32 %v156, %v182
    %v216 = vsub.f32 %v215, %v214
    %s217 = vtos %v216
    %s218 = scalar_lea.smem [#allocation5], 0
    %219 = sst [smem:[%s218]] %s217
    // Predicated region
    $region22: #{tpu_custom_call.1} parent=1 // pred_check
      _
    $region23: #{tpu_custom_call.1} parent=1 // pred_check_branch
      %221 = sbr.rel (0) target = $region25
    $region24: #{tpu_custom_call.1} parent=1 // pred_region
      %s223 = ssub.s32 16, 16
      %224 = vsyncadd [#allocation4], %s223
      %227 = dma.smem_to_hbm [#allocation5], 16, %s4, [#allocation4]
    $region25: #{tpu_custom_call.1} parent=1 // pred_fallthru
      _
    // Predicated region
    $region26: #{tpu_custom_call.1} parent=1 // pred_check
      _
    $region27: #{tpu_custom_call.1} parent=1 // pred_check_branch
      %229 = sbr.rel (0) target = $region29
    $region28: #{tpu_custom_call.1} parent=1 // pred_region
      %230 = dma.done [#allocation4], 16
    $region29: #{tpu_custom_call.1} parent=1 // pred_fallthru
      _
    %231 = sfence
    %232 = vsyncpa [#allocation3], 1
    %233 = vsyncpa [#allocation4], 1

</llo_original>
